<compile_context>
chip_gen: v7x
topology: tpu7x:2x2x1
jax: 0.10.0
libtpu: 0.0.40
codegen_flags: <defaults>
</compile_context>

<pallas_src>
import jax
import jax.numpy as jnp
from jax.experimental import pallas as pl
from jax.experimental.pallas import tpu as pltpu


def _yolo_kernel(p_ref, grid_ref, rowc_ref, out_ref):
    # p_ref:    (R, T)  raw predictions; R = nA*(5+nc) rows, T = HW-tile lanes
    # grid_ref: (2, T)  row 0 = grid_x*stride, row 1 = grid_y*stride
    # rowc_ref: (R, 4)  per-row constants: [scale, is_exp_row, is_x_row, is_y_row]
    p = p_ref[...].astype(jnp.float32)                      # in-kernel upcast
    scale = rowc_ref[:, 0:1]
    is_exp = rowc_ref[:, 1:2] > 0.5
    sel_x = rowc_ref[:, 2:3]
    sel_y = rowc_ref[:, 3:4]
    # One exp per element: w/h rows -> exp(p); other rows -> sigmoid(p)=1/(1+exp(-p)).
    e = jnp.exp(jnp.where(is_exp, p, -p))
    nonlin = jnp.where(is_exp, e, 1.0 / (1.0 + e))
    gx = grid_ref[0:1, :]
    gy = grid_ref[1:2, :]
    out_ref[...] = (nonlin * scale + sel_x * gx + sel_y * gy).astype(out_ref.dtype)


def yolo_layer_forward(sample, anchors, num_classes, img_height, img_width,
                       *, tile_hw=512, out_dtype=jnp.float32):
    """Inference forward of YOLOLayer.

    sample : (nB, nA*(5+num_classes), nGh, nGw)  (NCHW), f32 or bf16
    anchors: (nA, 2)  (anchor_w, anchor_h) in image pixels
    returns: (nB, nA*nGh*nGw, 5+num_classes)  out_dtype (default float32)
    """
    nB, C, H, W = sample.shape
    nA = anchors.shape[0]
    attrs = 5 + num_classes
    assert C == nA * attrs
    R = nA * attrs
    HW = H * W
    stride = float(img_height) / float(H)

    # HW tile: full extent if it fits, else a multiple of 128 (ragged last block OK).
    tile_hw = int(tile_hw)
    if HW <= tile_hw:
        tile_hw = HW
    else:
        tile_hw = max(128, (tile_hw // 128) * 128)
    n_tiles = pl.cdiv(HW, tile_hw)

    pred = sample.reshape(nB, R, HW)                        # contiguous glue reshape

    # (2, HW): additive grid offsets (already multiplied by stride).
    idx = jnp.arange(HW, dtype=jnp.int32)
    gridxy = jnp.stack([(idx % W).astype(jnp.float32) * stride,
                        (idx // W).astype(jnp.float32) * stride], axis=0)

    # (R, 4) per-row table: [mult scale, is_exp_row, is_x_row, is_y_row].
    # Note exp(w) * (anchor_w/stride) * stride == exp(w) * anchor_w (pixels).
    anchors_f = anchors.astype(jnp.float32)
    scale_rows = jnp.concatenate(
        [jnp.full((nA, 2), stride, jnp.float32),            # x, y rows: *stride
         anchors_f,                                         # w, h rows: *anchor px
         jnp.ones((nA, attrs - 4), jnp.float32)],           # conf / cls: *1
        axis=1).reshape(R, 1)
    c = jnp.tile(jnp.arange(attrs, dtype=jnp.int32), nA)[:, None]   # attr index per row
    rowc = jnp.concatenate(
        [scale_rows,
         ((c == 2) | (c == 3)).astype(jnp.float32),
         (c == 0).astype(jnp.float32),
         (c == 1).astype(jnp.float32)], axis=1)              # (R, 4)

    n_elem = nB * R * HW
    cost = pl.CostEstimate(
        flops=8 * n_elem,
        transcendentals=n_elem,
        bytes_accessed=int(n_elem * (sample.dtype.itemsize
                                     + jnp.dtype(out_dtype).itemsize)
                           + gridxy.size * 4 + rowc.size * 4))

    out = pl.pallas_call(
        _yolo_kernel,
        out_shape=jax.ShapeDtypeStruct((nB, R, HW), out_dtype),
        grid=(nB, n_tiles),
        in_specs=[
            pl.BlockSpec((None, R, tile_hw), lambda b, t: (b, 0, t)),
            pl.BlockSpec((2, tile_hw), lambda b, t: (0, t)),
            pl.BlockSpec((R, 4), lambda b, t: (0, 0)),
        ],
        out_specs=pl.BlockSpec((None, R, tile_hw), lambda b, t: (b, 0, t)),
        compiler_params=pltpu.CompilerParams(
            dimension_semantics=("parallel", "parallel")),
        cost_estimate=cost,
    )(pred, gridxy, rowc)

    # (nB, nA, attrs, HW) -> (nB, nA*HW, attrs): one XLA transpose fusion,
    # matching the PyTorch output layout exactly.
    out = out.reshape(nB, nA, attrs, HW)
    out = jnp.transpose(out, (0, 1, 3, 2)).reshape(nB, nA * HW, attrs)
    return out


def _reference_forward(sample, anchors, num_classes, img_height, img_width):
    """Pure-JAX reference mirroring the PyTorch forward (targets=None)."""
    nB, C, H, W = sample.shape
    nA = anchors.shape[0]
    attrs = 5 + num_classes
    stride = float(img_height) / float(H)
    pred = sample.astype(jnp.float32).reshape(nB, nA, attrs, H, W)
    pred = pred.transpose(0, 1, 3, 4, 2)
    x = jax.nn.sigmoid(pred[..., 0])
    y = jax.nn.sigmoid(pred[..., 1])
    w = pred[..., 2]
    h = pred[..., 3]
    conf = jax.nn.sigmoid(pred[..., 4])
    cls = jax.nn.sigmoid(pred[..., 5:])
    grid_x = jnp.arange(W, dtype=jnp.float32).reshape(1, 1, 1, W)
    grid_y = jnp.arange(H, dtype=jnp.float32).reshape(1, 1, H, 1)
    sa = anchors / stride
    aw = sa[:, 0].reshape(1, nA, 1, 1)
    ah = sa[:, 1].reshape(1, nA, 1, 1)
    bx = x + grid_x
    by = y + grid_y
    bw = jnp.exp(w) * aw
    bh = jnp.exp(h) * ah
    boxes = jnp.stack([bx, by, bw, bh], axis=-1)
    out = jnp.concatenate(
        [boxes.reshape(nB, -1, 4) * stride,
         conf.reshape(nB, -1, 1),
         cls.reshape(nB, -1, num_classes)], axis=-1)
    return out


def _run_case(key, nB, nA, num_classes, H, W, img_h, img_w, anchors, tile_hw):
    attrs = 5 + num_classes
    sample = jax.random.normal(key, (nB, nA * attrs, H, W), dtype=jnp.float32)
    out = yolo_layer_forward(sample, anchors, num_classes, img_h, img_w,
                             tile_hw=tile_hw)
    out = jax.block_until_ready(out)
    ref = _reference_forward(sample, anchors, num_classes, img_h, img_w)
    assert out.shape == (nB, nA * H * W, attrs), out.shape
    assert jnp.allclose(out, ref, atol=1e-4, rtol=1e-5), "mismatch vs reference"


if __name__ == "__main__":
    key = jax.random.PRNGKey(0)
    k1, k2 = jax.random.split(key)

    anchors = jnp.array([[81.0, 82.0], [135.0, 169.0], [344.0, 319.0]],
                        dtype=jnp.float32)

    # Case 1: nA=3 anchors, num_classes=3 -> attrs=8, C=24, 16x16 grid,
    # 512x512 image (stride 32).  HW=256: single full-extent tile per image.
    _run_case(k1, nB=2, nA=3, num_classes=3, H=16, W=16,
              img_h=512, img_w=512, anchors=anchors, tile_hw=512)

    # Case 2: 13x13 grid (HW=169, not a multiple of 128) with a small tile
    # to exercise the multi-tile + ragged last-block path (no padding).
    _run_case(k2, nB=2, nA=3, num_classes=3, H=13, W=13,
              img_h=512, img_w=512, anchors=anchors, tile_hw=128)

    print("KERNEL_OK")
</pallas_src>

<mosaic_0001>
module attributes {stable_mosaic.version = 11 : i64} {
  func.func @_yolo_kernel(%arg0: i32, %arg1: i32, %arg2: memref<1x24x256xf32, #tpu.memory_space<vmem>>, %arg3: memref<2x256xf32, #tpu.memory_space<vmem>>, %arg4: memref<24x4xf32, #tpu.memory_space<vmem>>, %arg5: memref<1x24x256xf32, #tpu.memory_space<vmem>>) attributes {dimension_semantics = [#tpu.dimension_semantics<parallel>, #tpu.dimension_semantics<parallel>], iteration_bounds = array<i64: 2, 1>, scalar_prefetch = 0 : i64, scratch_operands = 0 : i64, tpu.core_type = #tpu.core_type<tc>, window_params = [{transform_indices = @transform_0, window_bounds = array<i64: 1, 24, 256>}, {transform_indices = @transform_1, window_bounds = array<i64: 2, 256>}, {pipeline_mode = #tpu.pipeline_mode<synchronous>, transform_indices = @transform_2, window_bounds = array<i64: 24, 4>}, {transform_indices = @transform_3, window_bounds = array<i64: 1, 24, 256>}]} {
    %c0 = arith.constant 0 : index
    %c0_0 = arith.constant 0 : index
    %c0_1 = arith.constant 0 : index
    %0 = vector.load %arg2[%c0, %c0_0, %c0_1] : memref<1x24x256xf32, #tpu.memory_space<vmem>>, vector<1x24x256xf32>
    %1 = vector.shape_cast %0 : vector<1x24x256xf32> to vector<24x256xf32>
    %c0_2 = arith.constant 0 : index
    %c0_3 = arith.constant 0 : index
    %2 = vector.load %arg4[%c0_2, %c0_3] : memref<24x4xf32, #tpu.memory_space<vmem>>, vector<24x1xf32>
    %c0_4 = arith.constant 0 : index
    %c1 = arith.constant 1 : index
    %3 = vector.load %arg4[%c0_4, %c1] : memref<24x4xf32, #tpu.memory_space<vmem>>, vector<24x1xf32>
    %cst = arith.constant 5.000000e-01 : f32
    %4 = vector.broadcast %cst : f32 to vector<24x1xf32>
    %5 = arith.cmpf ogt, %3, %4 : vector<24x1xf32>
    %c0_5 = arith.constant 0 : index
    %c2 = arith.constant 2 : index
    %6 = vector.load %arg4[%c0_5, %c2] : memref<24x4xf32, #tpu.memory_space<vmem>>, vector<24x1xf32>
    %c0_6 = arith.constant 0 : index
    %c3 = arith.constant 3 : index
    %7 = vector.load %arg4[%c0_6, %c3] : memref<24x4xf32, #tpu.memory_space<vmem>>, vector<24x1xf32>
    %cst_7 = arith.constant 0.000000e+00 : f32
    %8 = vector.broadcast %cst_7 : f32 to vector<24x256xf32>
    %9 = arith.subf %8, %1 : vector<24x256xf32>
    %10 = vector.shape_cast %5 : vector<24x1xi1> to vector<24x1xi1>
    %11 = vector.broadcast %10 : vector<24x1xi1> to vector<24x256xi1>
    %12 = arith.select %11, %1, %9 : vector<24x256xi1>, vector<24x256xf32>
    %13 = math.exp %12 : vector<24x256xf32>
    %cst_8 = arith.constant 1.000000e+00 : f32
    %14 = vector.broadcast %cst_8 : f32 to vector<24x256xf32>
    %15 = arith.addf %14, %13 : vector<24x256xf32>
    %cst_9 = arith.constant 1.000000e+00 : f32
    %16 = vector.broadcast %cst_9 : f32 to vector<24x256xf32>
    %17 = arith.divf %16, %15 : vector<24x256xf32>
    %18 = vector.shape_cast %5 : vector<24x1xi1> to vector<24x1xi1>
    %19 = vector.broadcast %18 : vector<24x1xi1> to vector<24x256xi1>
    %20 = arith.select %19, %13, %17 : vector<24x256xi1>, vector<24x256xf32>
    %c0_10 = arith.constant 0 : index
    %c0_11 = arith.constant 0 : index
    %21 = vector.load %arg3[%c0_10, %c0_11] : memref<2x256xf32, #tpu.memory_space<vmem>>, vector<1x256xf32>
    %c1_12 = arith.constant 1 : index
    %c0_13 = arith.constant 0 : index
    %22 = vector.load %arg3[%c1_12, %c0_13] : memref<2x256xf32, #tpu.memory_space<vmem>>, vector<1x256xf32>
    %23 = vector.broadcast %2 : vector<24x1xf32> to vector<24x256xf32>
    %24 = arith.mulf %20, %23 : vector<24x256xf32>
    %25 = vector.broadcast %6 : vector<24x1xf32> to vector<24x256xf32>
    %26 = vector.broadcast %21 : vector<1x256xf32> to vector<24x256xf32>
    %27 = arith.mulf %25, %26 : vector<24x256xf32>
    %28 = arith.addf %24, %27 : vector<24x256xf32>
    %29 = vector.broadcast %7 : vector<24x1xf32> to vector<24x256xf32>
    %30 = vector.broadcast %22 : vector<1x256xf32> to vector<24x256xf32>
    %31 = arith.mulf %29, %30 : vector<24x256xf32>
    %32 = arith.addf %28, %31 : vector<24x256xf32>
    %c0_14 = arith.constant 0 : index
    %c0_15 = arith.constant 0 : index
    %c0_16 = arith.constant 0 : index
    %33 = vector.load %arg5[%c0_14, %c0_15, %c0_16] : memref<1x24x256xf32, #tpu.memory_space<vmem>>, vector<1x24x256xf32>
    %34 = vector.shape_cast %33 : vector<1x24x256xf32> to vector<24x256xf32>
    %35 = vector.shape_cast %32 : vector<24x256xf32> to vector<1x24x256xf32>
    tpu.vector_store %arg5[%c0_14, %c0_15, %c0_16], %35 {strides = array<i32>} : memref<1x24x256xf32, #tpu.memory_space<vmem>>, vector<1x24x256xf32>,
    return
  }
  func.func @transform_0(%arg0: i32, %arg1: i32) -> (i32, i32, i32) {
    %c0_i32 = arith.constant 0 : i32
    %c0_i32_0 = arith.constant 0 : i32
    return %arg0, %c0_i32, %arg1 : i32, i32, i32
  }
  func.func @transform_1(%arg0: i32, %arg1: i32) -> (i32, i32) {
    %c0_i32 = arith.constant 0 : i32
    %c0_i32_0 = arith.constant 0 : i32
    return %c0_i32, %arg1 : i32, i32
  }
  func.func @transform_2(%arg0: i32, %arg1: i32) -> (i32, i32) {
    %c0_i32 = arith.constant 0 : i32
    %c0_i32_0 = arith.constant 0 : i32
    %c0_i32_1 = arith.constant 0 : i32
    return %c0_i32, %c0_i32_0 : i32, i32
  }
  func.func @transform_3(%arg0: i32, %arg1: i32) -> (i32, i32, i32) {
    %c0_i32 = arith.constant 0 : i32
    %c0_i32_0 = arith.constant 0 : i32
    return %arg0, %c0_i32, %arg1 : i32, i32, i32
  }
}

</mosaic_0001>

<llo_original>
// kernel: tpu_custom_call.1
$region0: #{tpu_custom_call.1}
  #allocation0 [shape = 'u32[]', space=smem, size = 0x4, offset = 0x4, fixed_abs, tag = 'smem constant byte address 0x4 - core index']
  #allocation1 [shape = 'u32[144,128]{1,0:T(1,128)}', space=vmem, size = 0x12000, scoped, tag = 'internal scratch']
  %s0 = inlined_call_operand.hbm [shape: f32[2,24,256], index: 0, kind: input, shape index: {}]
  %s1 = inlined_call_operand.vmem [shape: f32[2,256], index: 1, kind: input, shape index: {}]
  %s2 = inlined_call_operand.vmem [shape: f32[24,4], index: 2, kind: input, shape index: {}]
  %s3 = inlined_call_operand.hbm [shape: f32[2,24,256], index: 3, kind: output, shape index: {}]
  %s4 = sld [smem:[#allocation0]]
  $region49: #{tpu_custom_call.1} parent=0
    _
  %s6 = ssub.s32 1, %s4
  %s7 = scalar_select 0, %s6, %s4
  $region1: #{tpu_custom_call.1} parent=0
    #allocation2 [shape = 'u8[49152]{0}', space=vmem, size = 0xc000, scoped, tag = 'input window, operand 0']
    #allocation3 [shape = 's32[2]{0}', space=sflag, size = 0x8, scoped, tag = 'scoped memory for tpu_custom_call.1']
    #allocation4 [shape = 's32[2]{0}', space=sflag, size = 0x8, scoped, tag = 'scoped memory for tpu_custom_call.1']
    #allocation5 [shape = 'u8[49152]{0}', space=vmem, size = 0xc000, scoped, tag = 'output window, operand 0']
    %8 = vsyncpa [#allocation3], 0
    %s9 = scalar_lea.sflag [#allocation3], 1
    %10 = vsyncpa %s9, 0
    %11 = vsyncpa [#allocation4], 0
    %s12 = scalar_lea.sflag [#allocation4], 1
    %13 = vsyncpa %s12, 0
    loop: start=0, step=1, limit=4
    $region2: #{tpu_custom_call.1} parent=1 // loop_pre_header
      _
    $region3: #{tpu_custom_call.1} parent=1 // loop_header
      %s15 = sphi 0, %s19
      %p16 = scmp.ge.s32.totalorder %s15, 4
      %s22 = sphi 0, %s34
      %s23 = sphi 0, %s30
      %s24 = sphi 0, %s22
      %s25 = sphi 0, %s23
      %s26 = sphi 0, %s24
      %s27 = sphi 0, %s25
      %s39 = sphi 0, %s41
      %s42 = sphi 0, %s39
      %s43 = sphi 0, %s42
      %s59 = sphi 0, %s43
      %s65 = sphi 0, %s67
      %s68 = sphi 0, %s65
      %s69 = sphi 0, %s68
      %s85 = sphi 0, %s69
      %s89 = sphi 0, %s89
      %s91 = sphi 0, %s89
      %s92 = sphi 0, %s91
      %s106 = sphi 0, %s92
      %s114 = sphi 0, %s116
      %s117 = sphi 0, %s114
      %s118 = sphi 0, %s117
      %s134 = sphi 0, %s118
    $region4: #{tpu_custom_call.1} parent=1 // loop_header_branch
      %18 = sbr.rel (%p16) target = $region8
    $region5: #{tpu_custom_call.1} parent=1 // loop_body
      %s20 = ssub.s32 %s15, 1
      %s21 = ssub.s32 %s15, 2
      %s28 = sadd.s32 1, %s23
      %p29 = scmp.ge.s32.totalorder %s28, 1
      %s30 = scalar_select %p29, 0, %s28
      %s31 = sadd.s32 1, %s22
      %s32 = scalar_select %p29, %s31, %s22
      %p33 = scmp.ge.s32.totalorder %s32, 2
      %s34 = scalar_select %p33, 0, %s32
      %s35 = ssub.s32 %s22, %s34
      %s36 = ssub.s32 %s23, %s30
      %s37 = sor.u32 %s35, %s36
      %p38 = scmp.eq.s32.totalorder %s37, 0
      %s40 = sadd.s32 %s39, 1
      %s41 = scalar_select %p38, %s39, %s40
      %p44 = pneg %p38
      %p45 = scmp.eq.s32.totalorder %s15, 1
      %p46 = por %p44, %p45
      %p47 = scmp.ne.s32.totalorder %s39, %s42
      %p48 = scmp.eq.s32.totalorder %s15, 0
      %p49 = por %p47, %p48
      %p50 = scmp.ne.s32.totalorder %s39, %s42
      %p51 = scmp.eq.s32.totalorder %s20, 1
      %p52 = por %p50, %p51
      %p53 = scmp.ne.s32.totalorder %s42, %s43
      %p54 = scmp.eq.s32.totalorder %s20, 0
      %p55 = por %p53, %p54
      %p56 = scmp.ne.s32.totalorder %s42, %s43
      %p57 = scmp.eq.s32.totalorder %s21, 1
      %p58 = por %p56, %p57
      %p60 = scmp.ne.s32.totalorder %s43, %s59
      %p61 = scmp.eq.s32.totalorder %s21, 0
      %p62 = por %p60, %p61
      %s63 = ssub.s32 %s23, %s30
      %p64 = scmp.eq.s32.totalorder %s63, 0
      %s66 = sadd.s32 %s65, 1
      %s67 = scalar_select %p64, %s65, %s66
      %p70 = pneg %p64
      %p71 = scmp.eq.s32.totalorder %s15, 1
      %p72 = por %p70, %p71
      %p73 = scmp.ne.s32.totalorder %s65, %s68
      %p74 = scmp.eq.s32.totalorder %s15, 0
      %p75 = por %p73, %p74
      %p76 = scmp.ne.s32.totalorder %s65, %s68
      %p77 = scmp.eq.s32.totalorder %s20, 1
      %p78 = por %p76, %p77
      %p79 = scmp.ne.s32.totalorder %s68, %s69
      %p80 = scmp.eq.s32.totalorder %s20, 0
      %p81 = por %p79, %p80
      %p82 = scmp.ne.s32.totalorder %s68, %s69
      %p83 = scmp.eq.s32.totalorder %s21, 1
      %p84 = por %p82, %p83
      %p86 = scmp.ne.s32.totalorder %s69, %s85
      %p87 = scmp.eq.s32.totalorder %s21, 0
      %p88 = por %p86, %p87
      %s90 = sadd.s32 %s89, 1
      %p93 = scmp.eq.s32.totalorder %s15, 1
      %p94 = scmp.ne.s32.totalorder %s89, %s91
      %p95 = scmp.eq.s32.totalorder %s15, 0
      %p96 = por %p94, %p95
      %p97 = scmp.ne.s32.totalorder %s89, %s91
      %p98 = scmp.eq.s32.totalorder %s20, 1
      %p99 = por %p97, %p98
      %p100 = scmp.ne.s32.totalorder %s91, %s92
      %p101 = scmp.eq.s32.totalorder %s20, 0
      %p102 = por %p100, %p101
      %p103 = scmp.ne.s32.totalorder %s91, %s92
      %p104 = scmp.eq.s32.totalorder %s21, 1
      %p105 = por %p103, %p104
      %p107 = scmp.ne.s32.totalorder %s92, %s106
      %p108 = scmp.eq.s32.totalorder %s21, 0
      %p109 = por %p107, %p108
      %s110 = ssub.s32 %s22, %s34
      %s111 = ssub.s32 %s23, %s30
      %s112 = sor.u32 %s110, %s111
      %p113 = scmp.eq.s32.totalorder %s112, 0
      %s115 = sadd.s32 %s114, 1
      %s116 = scalar_select %p113, %s114, %s115
      %p119 = pneg %p113
      %p120 = scmp.eq.s32.totalorder %s15, 1
      %p121 = por %p119, %p120
      %p122 = scmp.ne.s32.totalorder %s114, %s117
      %p123 = scmp.eq.s32.totalorder %s15, 0
      %p124 = por %p122, %p123
      %p125 = scmp.ne.s32.totalorder %s114, %s117
      %p126 = scmp.eq.s32.totalorder %s20, 1
      %p127 = por %p125, %p126
      %p128 = scmp.ne.s32.totalorder %s117, %s118
      %p129 = scmp.eq.s32.totalorder %s20, 0
      %p130 = por %p128, %p129
      %p131 = scmp.ne.s32.totalorder %s117, %s118
      %p132 = scmp.eq.s32.totalorder %s21, 1
      %p133 = por %p131, %p132
      %p135 = scmp.ne.s32.totalorder %s118, %s134
      %p136 = scmp.eq.s32.totalorder %s21, 0
      %p137 = por %p135, %p136
      %p138 = scmp.le.s32.totalorder 1, %s15
      %p139 = scmp.lt.s32.totalorder %s15, 3
      %p140 = pnand %p138, %p139
      %p141 = pneg %p140
      // Predicated region
      $region9: #{tpu_custom_call.1} parent=5 // pred_check
        _
      $region10: #{tpu_custom_call.1} parent=5 // pred_check_branch
        %143 = sbr.rel (%p140) target = $region12
      $region11: #{tpu_custom_call.1} parent=5 // pred_region
        %s144 = ssub.s32 %s15, 1
        // Predicated region
        $region13: #{tpu_custom_call.1} parent=11 // pred_check
          %p145 = pneg %p81
        $region14: #{tpu_custom_call.1} parent=11 // pred_check_branch
          %147 = sbr.rel (%p145) target = $region16
        $region15: #{tpu_custom_call.1} parent=11 // pred_region
          %s148 = smul.u32 2, %s25
          %p149 = scmp.lt.s32.totalorder %s148, 1
          %s150 = scalar_select %p149, %s148, 1
          %s151 = smul.addr %s150, 2
          %s152 = scalar_lea.vmem %s1, %s151
          %s153 = smul.u32 2, %s25
        $region16: #{tpu_custom_call.1} parent=11 // pred_fallthru
          _
        // Predicated region
        $region17: #{tpu_custom_call.1} parent=11 // pred_check
          %p154 = pneg %p102
        $region18: #{tpu_custom_call.1} parent=11 // pred_check_branch
          %156 = sbr.rel (%p154) target = $region20
        $region19: #{tpu_custom_call.1} parent=11 // pred_region
          _
        $region20: #{tpu_custom_call.1} parent=11 // pred_fallthru
          _
      $region12: #{tpu_custom_call.1} parent=5 // pred_fallthru
        _
      %p157 = scmp.lt.s32.totalorder %s15, 2
      // Predicated region
      $region21: #{tpu_custom_call.1} parent=5 // pred_check
        %p158 = pneg %p157
      $region22: #{tpu_custom_call.1} parent=5 // pred_check_branch
        %160 = sbr.rel (%p158) target = $region24
      $region23: #{tpu_custom_call.1} parent=5 // pred_region
        // Predicated region
        $region25: #{tpu_custom_call.1} parent=23 // pred_check
          %p161 = pneg %p49
        $region26: #{tpu_custom_call.1} parent=23 // pred_check_branch
          %163 = sbr.rel (%p161) target = $region28
        $region27: #{tpu_custom_call.1} parent=23 // pred_region
          %s164 = sand.u32 %s39, 1
          %s165 = scalar_lea.sflag [#allocation3], %s164
          %s166 = sand.u32 %s39, 1
          %s167 = smul.addr %s166, 48
          %s168 = scalar_lea.vmem [#allocation2], %s167
          %s169 = smul.u32 2, %s23
          %s171 = ssub.s32 768, 768
          %172 = vsyncadd %s165, %s171
          %s173 = smul.addr %s22, 6
          %s174 = sadd.s32 %s169, %s173
          %s175 = smul.addr %s174, 128
          %s176 = scalar_lea.hbm %s0, %s175
          %s177 = sshll.u32 %s168, 4
          %s178 = int_to_ptr.vmem [resolvable:$true] %s177
          %183 = dma.hbm_to_vmem [thread:$0]  %s176, 768, %s178, %s165, 256, 256, 16
        $region28: #{tpu_custom_call.1} parent=23 // pred_fallthru
          _
      $region24: #{tpu_custom_call.1} parent=5 // pred_fallthru
        _
      %p184 = scmp.le.s32.totalorder 1, %s15
      %p185 = scmp.lt.s32.totalorder %s15, 3
      %p186 = pnand %p184, %p185
      %p187 = pneg %p186
      // Predicated region
      $region29: #{tpu_custom_call.1} parent=5 // pred_check
        _
      $region30: #{tpu_custom_call.1} parent=5 // pred_check_branch
        %189 = sbr.rel (%p186) target = $region32
      $region31: #{tpu_custom_call.1} parent=5 // pred_region
        %s190 = ssub.s32 %s15, 1
        %s191 = sand.u32 %s42, 1
        %s192 = scalar_lea.sflag [#allocation3], %s191
        %s193 = sand.u32 %s42, 1
        %s194 = smul.addr %s193, 48
        %s195 = scalar_lea.vmem [#allocation2], %s194
        // Predicated region
        $region33: #{tpu_custom_call.1} parent=31 // pred_check
          %p196 = pneg %p55
        $region34: #{tpu_custom_call.1} parent=31 // pred_check_branch
          %198 = sbr.rel (%p196) target = $region36
        $region35: #{tpu_custom_call.1} parent=31 // pred_region
          %199 = dma.done %s192, 768
        $region36: #{tpu_custom_call.1} parent=31 // pred_fallthru
          _
        %s200 = sand.u32 %s42, 1
        %s201 = scalar_lea.sflag [#allocation3], %s200
        %s202 = sand.u32 %s42, 1
        %s203 = smul.addr %s202, 48
        %s204 = scalar_lea.vmem [#allocation2], %s203
        %p205 = pneg %p55
        %p206 = pneg %p52
        %s207 = smul.u32 2, %s25
        %p208 = scmp.lt.s32.totalorder %s207, 1
        %s209 = scalar_select %p208, %s207, 1
        %s210 = smul.addr %s209, 2
        %s211 = scalar_lea.vmem %s1, %s210
        %p212 = pneg %p81
        %p213 = pneg %p78
        %p214 = pneg %p102
        %p215 = pneg %p99
        %p216 = pneg %p130
        %p217 = pneg %p127
        %s218 = sand.u32 %s117, 1
        %s219 = scalar_lea.sflag [#allocation4], %s218
        %s220 = sand.u32 %s117, 1
        %s221 = smul.addr %s220, 48
        %s222 = scalar_lea.vmem [#allocation5], %s221
        %s223 = smul.u32 2, %s25
        %s224 = smul.u32 2, %s25
        %p225 = scmp.lt.s32.totalorder %s224, 1
        %s226 = scalar_select %p225, %s224, 1
        %s227 = smul.addr %s226, 2
        %s228 = scalar_lea.vmem %s1, %s227
        %s229 = smul.u32 2, %s25
        %s230 = smul.u32 2, %s25
        %v231 = vld [vmem:[%s195] sm:$0xff]
        %v232 = vld [vmem:[%s195 + $0x8] sm:$0xff]
        %v233 = vld [vmem:[%s195 + $0x10] sm:$0xff]
        %v234 = vld [vmem:[%s195 + $0x18] sm:$0xff]
        %v235 = vld [vmem:[%s195 + $0x20] sm:$0xff]
        %v236 = vld [vmem:[%s195 + $0x28] sm:$0xff]
        %v237 = vld [vmem:[%s2] sm:$0xff]
        %v238 = vld [vmem:[%s2 + $0x8] sm:$0xff]
        %v239 = vld [vmem:[%s2 + $0x10] sm:$0xff]
        %vm240 = vcmp.gt.f32.partialorder %v237, 0.5
        %vm241 = vcmp.gt.f32.partialorder %v238, 0.5
        %vm242 = vcmp.gt.f32.partialorder %v239, 0.5
        %v243 = vsub.f32 0.0, %v231
        %v244 = vsub.f32 0.0, %v232
        %v245 = vsub.f32 0.0, %v233
        %v246 = vsub.f32 0.0, %v234
        %v247 = vsub.f32 0.0, %v235
        %v248 = vsub.f32 0.0, %v236
        %v249 = vsel %vm240, 1, 0
        %v250 = vsel %vm241, 1, 0
        %v251 = vsel %vm242, 1, 0
        %252 = vset.pattern.permute.xlu0 1
        %253 = vperm.xlu0 %252, %v249
        %v254 = vpop.permute.xlu0 %253
        %255 = vset.pattern.permute.xlu0 1
        %256 = vperm.xlu0 %255, %v250
        %v257 = vpop.permute.xlu0 %256
        %258 = vset.pattern.permute.xlu0 1
        %259 = vperm.xlu0 %258, %v251
        %v260 = vpop.permute.xlu0 %259
        %vm261 = vcmp.eq.s32.totalorder %v254, 1
        %vm262 = vcmp.eq.s32.totalorder %v257, 1
        %vm263 = vcmp.eq.s32.totalorder %v260, 1
        %v264 = vsel %vm261, %v231, %v243
        %v265 = vsel %vm261, %v232, %v244
        %v266 = vsel %vm262, %v233, %v245
        %v267 = vsel %vm262, %v234, %v246
        %v268 = vsel %vm263, %v235, %v247
        %v269 = vsel %vm263, %v236, %v248
        %v270 = vmul.f32 %v264, 1.442695
        %v271 = vpow.pop %v270
        %v272 = vmul.f32 %v265, 1.442695
        %v273 = vpow.pop %v272
        %v274 = vmul.f32 %v266, 1.442695
        %v275 = vpow.pop %v274
        %v276 = vmul.f32 %v267, 1.442695
        %v277 = vpow.pop %v276
        %v278 = vmul.f32 %v268, 1.442695
        %v279 = vpow.pop %v278
        %v280 = vmul.f32 %v269, 1.442695
        %v281 = vpow.pop %v280
        %v282 = vadd.f32 %v271, 1.0
        %v283 = vadd.f32 %v273, 1.0
        %v284 = vadd.f32 %v275, 1.0
        %v285 = vadd.f32 %v277, 1.0
        %v286 = vadd.f32 %v279, 1.0
        %v287 = vadd.f32 %v281, 1.0
        %v288 = vrcp.pop %v282
        %v289 = vmul.f32 1.0, %v288
        %v290 = vrcp.pop %v283
        %v291 = vmul.f32 1.0, %v290
        %v292 = vrcp.pop %v284
        %v293 = vmul.f32 1.0, %v292
        %v294 = vrcp.pop %v285
        %v295 = vmul.f32 1.0, %v294
        %v296 = vrcp.pop %v286
        %v297 = vmul.f32 1.0, %v296
        %v298 = vrcp.pop %v287
        %v299 = vmul.f32 1.0, %v298
        %v300 = vsel %vm261, %v271, %v289
        %v301 = vsel %vm261, %v273, %v291
        %v302 = vsel %vm262, %v275, %v293
        %v303 = vsel %vm262, %v277, %v295
        %v304 = vsel %vm263, %v279, %v297
        %v305 = vsel %vm263, %v281, %v299
        %v306 = vld [vmem:[%s228] ss:$2 sm:$0x3]
        %s307 = scalar_lea.vmem %s228, 1
        %v308 = vld [vmem:[%s307] ss:$2 sm:$0x3]
        %310 = vset.pattern.permute.xlu0 0
        %311 = vperm.xlu0 %310, %v237
        %v312 = vpop.permute.xlu0 %311
        %315 = vset.pattern.permute.xlu0 0
        %316 = vperm.xlu0 %315, %v238
        %v317 = vpop.permute.xlu0 %316
        %320 = vset.pattern.permute.xlu0 0
        %321 = vperm.xlu0 %320, %v239
        %v322 = vpop.permute.xlu0 %321
        %v324 = vmul.f32 %v300, %v312
        %v325 = vmul.f32 %v301, %v312
        %v326 = vmul.f32 %v302, %v317
        %v327 = vmul.f32 %v303, %v317
        %v328 = vmul.f32 %v304, %v322
        %v329 = vmul.f32 %v305, %v322
        %330 = vset.pattern.permute.xlu0 2
        %331 = vperm.xlu0 %330, %v237
        %v332 = vpop.permute.xlu0 %331
        %334 = vset.pattern.permute.xlu0 2
        %335 = vperm.xlu0 %334, %v238
        %v336 = vpop.permute.xlu0 %335
        %338 = vset.pattern.permute.xlu0 2
        %339 = vperm.xlu0 %338, %v239
        %v340 = vpop.permute.xlu0 %339
        %v343 = vlaneseq
        %v344 = vshrl.u32 %v343, 7
        %v345 = vsub.s32 0, %v344
        %v346 = vrot.slane %v306, %v345
        %v347 = vlaneseq
        %v348 = vshrl.u32 %v347, 7
        %v349 = vsub.s32 1, %v348
        %v350 = vrot.slane %v306, %v349
        %v353 = vmul.f32 %v332, %v346
        %v354 = vmul.f32 %v332, %v350
        %v355 = vmul.f32 %v336, %v346
        %v356 = vmul.f32 %v336, %v350
        %v357 = vmul.f32 %v340, %v346
        %v358 = vmul.f32 %v340, %v350
        %v359 = vadd.f32 %v324, %v353
        %v360 = vadd.f32 %v325, %v354
        %v361 = vadd.f32 %v326, %v355
        %v362 = vadd.f32 %v327, %v356
        %v363 = vadd.f32 %v328, %v357
        %v364 = vadd.f32 %v329, %v358
        %365 = vset.pattern.permute.xlu0 3
        %366 = vperm.xlu0 %365, %v237
        %v367 = vpop.permute.xlu0 %366
        %369 = vset.pattern.permute.xlu0 3
        %370 = vperm.xlu0 %369, %v238
        %v371 = vpop.permute.xlu0 %370
        %373 = vset.pattern.permute.xlu0 3
        %374 = vperm.xlu0 %373, %v239
        %v375 = vpop.permute.xlu0 %374
        %v378 = vlaneseq
        %v379 = vshrl.u32 %v378, 7
        %v380 = vsub.s32 0, %v379
        %v381 = vrot.slane %v308, %v380
        %v382 = vlaneseq
        %v383 = vshrl.u32 %v382, 7
        %v384 = vsub.s32 1, %v383
        %v385 = vrot.slane %v308, %v384
        %v388 = vmul.f32 %v367, %v381
        %v389 = vmul.f32 %v367, %v385
        %v390 = vmul.f32 %v371, %v381
        %v391 = vmul.f32 %v371, %v385
        %v392 = vmul.f32 %v375, %v381
        %v393 = vmul.f32 %v375, %v385
        %v394 = vadd.f32 %v359, %v388
        %v395 = vadd.f32 %v360, %v389
        %v396 = vadd.f32 %v361, %v390
        %v397 = vadd.f32 %v362, %v391
        %v398 = vadd.f32 %v363, %v392
        %v399 = vadd.f32 %v364, %v393
        %400 = vst [vmem:[%s222] sm:$0xff] %v394
        %401 = vst [vmem:[%s222 + $0x8] sm:$0xff] %v395
        %402 = vst [vmem:[%s222 + $0x10] sm:$0xff] %v396
        %403 = vst [vmem:[%s222 + $0x18] sm:$0xff] %v397
        %404 = vst [vmem:[%s222 + $0x20] sm:$0xff] %v398
        %405 = vst [vmem:[%s222 + $0x28] sm:$0xff] %v399
        %s406 = sand.u32 %s117, 1
        %s407 = scalar_lea.sflag [#allocation4], %s406
        %s408 = sand.u32 %s117, 1
        %s409 = smul.addr %s408, 48
        %s410 = scalar_lea.vmem [#allocation5], %s409
        // Predicated region
        $region37: #{tpu_custom_call.1} parent=31 // pred_check
          %p411 = pneg %p127
        $region38: #{tpu_custom_call.1} parent=31 // pred_check_branch
          %413 = sbr.rel (%p411) target = $region40
        $region39: #{tpu_custom_call.1} parent=31 // pred_region
          %s414 = smul.u32 2, %s25
          %s416 = ssub.s32 768, 768
          %417 = vsyncadd %s407, %s416
          %s418 = smul.addr %s24, 6
          %s419 = sadd.s32 %s414, %s418
          %s420 = smul.addr %s419, 128
          %s421 = scalar_lea.hbm %s3, %s420
          %s422 = sshll.u32 %s410, 4
          %s423 = int_to_ptr.vmem [resolvable:$true] %s422
          %428 = dma.vmem_to_hbm [thread:$0]  %s423, 768, %s421, %s407, 256, 256, 16
        $region40: #{tpu_custom_call.1} parent=31 // pred_fallthru
          _
      $region32: #{tpu_custom_call.1} parent=5 // pred_fallthru
        _
      %p429 = scmp.le.s32.totalorder 2, %s15
      // Predicated region
      $region41: #{tpu_custom_call.1} parent=5 // pred_check
        %p430 = pneg %p429
      $region42: #{tpu_custom_call.1} parent=5 // pred_check_branch
        %432 = sbr.rel (%p430) target = $region44
      $region43: #{tpu_custom_call.1} parent=5 // pred_region
        %s433 = ssub.s32 %s15, 2
        // Predicated region
        $region45: #{tpu_custom_call.1} parent=43 // pred_check
          %p434 = pneg %p133
        $region46: #{tpu_custom_call.1} parent=43 // pred_check_branch
          %436 = sbr.rel (%p434) target = $region48
        $region47: #{tpu_custom_call.1} parent=43 // pred_region
          %s437 = sand.u32 %s118, 1
          %s438 = scalar_lea.sflag [#allocation4], %s437
          %s439 = sand.u32 %s118, 1
          %s440 = smul.addr %s439, 48
          %s441 = scalar_lea.vmem [#allocation5], %s440
          %442 = dma.done %s438, 768
        $region48: #{tpu_custom_call.1} parent=43 // pred_fallthru
          _
      $region44: #{tpu_custom_call.1} parent=5 // pred_fallthru
        _
    $region6: #{tpu_custom_call.1} parent=1 // loop_footer
      %s19 = sadd.s32 1, %s15
    $region7: #{tpu_custom_call.1} parent=1 // loop_footer_branch
      %14 = sbr.rel target = $region3
    $region8: #{tpu_custom_call.1} parent=1 // loop_exit
      _
    %443 = vsyncpa [#allocation3], 1
    %s444 = scalar_lea.sflag [#allocation3], 1
    %445 = vsyncpa %s444, 1
    %446 = vsyncpa [#allocation4], 1
    %s447 = scalar_lea.sflag [#allocation4], 1
    %448 = vsyncpa %s447, 1

</llo_original>
